<compile_context>
chip_gen: v7x
topology: tpu7x:2x2x1
jax: 0.10.0
libtpu: 0.0.40
codegen_flags: <defaults>
</compile_context>

<pallas_src>
import functools

import jax
import jax.numpy as jnp
from jax.experimental import pallas as pl
from jax.experimental.pallas import tpu as pltpu

BN_EPS = 1e-5
LANE = 128


def _fused_conv_bn_mul_kernel(patches_ref, w_ref, bn_ref, out_ref, *, inv_p):
    """s = patches @ w (Conv3d as im2col matmul, bias folded into column K),
    t = batchnorm(s) with batch statistics (training-mode BN),
    out = s * t.  Epilogue entirely in f32."""
    # Conv3d hot path: one lane-dense bf16 MXU matmul with f32 accumulation.
    # The folded-bias column means no separate bias add is needed.
    s = jnp.dot(patches_ref[...], w_ref[...],
                preferred_element_type=jnp.float32)            # (P, C_pad) f32

    # Training-mode BN statistics over all P = N*Do*Ho*Wo positions per channel
    # (axis 0).  Two-pass form; (s - mean) is reused for the normalize so this
    # costs no extra full-size op and avoids E[s^2]-mean^2 cancellation.
    # inv_p is baked statically; P is never padded (invariant: do not pad P),
    # so padded rows can never pollute the statistics.
    mean = jnp.sum(s, axis=0, keepdims=True) * inv_p           # (1, C_pad)
    d = s - mean
    var = jnp.sum(d * d, axis=0, keepdims=True) * inv_p

    bn = bn_ref[...]                                           # (8, C_pad) f32
    gamma = bn[0:1, :]
    beta = bn[1:2, :]
    # gamma folded into the rsqrt (saves one full (P, C_pad) VALU multiply);
    # rsqrt runs on the otherwise-idle EUP slot.  Padded channels stay inert:
    # s=0 -> mean=var=0 -> scale=gamma(=0)*rsqrt(eps)=0 -> t=0 -> out=0.
    scale = gamma * jax.lax.rsqrt(var + BN_EPS)
    t = d * scale + beta

    out_ref[...] = s * t


@jax.jit
def model_forward(x, conv_w, conv_b, bn_gamma, bn_beta):
    """x: (N, Cin, D, H, W) f32, conv_w: (Cout, Cin, k, k, k) f32 -> NCDHW f32."""
    Cout, Cin, k, _, _ = conv_w.shape
    N, _, D, H, W = x.shape
    Do, Ho, Wo = D - k + 1, H - k + 1, W - k + 1
    P = N * Do * Ho * Wo
    K = Cin * k * k * k

    # Lane (last-dim) padding to 128 -> unmasked MXU pass and unmasked vst on
    # all of v5e/v6e/v7x.  +1 on K for the folded-bias ones column.
    K_pad = pl.cdiv(K + 1, LANE) * LANE
    C_pad = pl.cdiv(Cout, LANE) * LANE
    # NOTE: P is NOT padded — BN stats are a mean over the P rows.

    # im2col as a single fused XLA op (identity-kernel conv).  Output channel
    # order is (cin major; dz, dy, dx minor), matching conv_w.reshape(Cout, K).
    # Done in bf16 (exact: pure data movement) so the patches DMA is half-size.
    x_bf = x.astype(jnp.bfloat16)
    patches = jax.lax.conv_general_dilated_patches(
        x_bf, filter_shape=(k, k, k), window_strides=(1, 1, 1),
        padding="VALID")                                   # (N, K, Do, Ho, Wo)
    patches = jnp.moveaxis(patches, 1, 4).reshape(P, K)

    # Fold the conv bias into the matmul: ones column at index K in patches,
    # bias in weight row K (the rest of the K-pad region stays zero).
    ones_col = jnp.ones((P, 1), jnp.bfloat16)
    patches_p = jnp.pad(jnp.concatenate([patches, ones_col], axis=1),
                        ((0, 0), (0, K_pad - K - 1)))      # (P, K_pad) bf16

    w2d = conv_w.astype(jnp.bfloat16).reshape(Cout, K).T   # (K, Cout) same order
    w_aug = jnp.concatenate(
        [w2d, conv_b.astype(jnp.bfloat16).reshape(1, Cout)], axis=0)
    w_p = jnp.pad(w_aug, ((0, K_pad - K - 1), (0, C_pad - Cout)))  # (K_pad, C_pad)

    # gamma/beta packed into one (8, C_pad) f32 input: row 0 gamma, row 1 beta.
    bn_p = jnp.pad(jnp.stack([bn_gamma, bn_beta]).astype(jnp.float32),
                   ((0, 6), (0, C_pad - Cout)))            # (8, C_pad) f32

    cost = pl.CostEstimate(
        flops=2 * P * K_pad * C_pad,
        transcendentals=C_pad,
        bytes_accessed=2 * (P * K_pad + K_pad * C_pad)     # bf16 inputs
        + 4 * (8 * C_pad + P * C_pad),                     # f32 bn params + out
    )

    # TODO(synk): if scaled beyond this toy shape, add a grid over P with a
    # two-pass BN (partial sums -> global stats -> normalize) and:
    #   v6e/v7x: M/K/N tiles in multiples of 256 (2x256x256 MXU), a leading
    #            "parallel" grid axis so v7x's 2 TensorCores are both used, and
    #            a VMEM budget against v7x's 64 MiB via
    #            pltpu.CompilerParams(vmem_limit_bytes=...).
    #   v5e:     keep 128-multiple tiles and the f32 epilogue (no bf16 VPU/EUP).
    out_p = pl.pallas_call(
        functools.partial(_fused_conv_bn_mul_kernel, inv_p=1.0 / P),
        out_shape=jax.ShapeDtypeStruct((P, C_pad), jnp.float32),
        in_specs=[
            pl.BlockSpec(memory_space=pltpu.MemorySpace.VMEM),  # patches (bf16)
            pl.BlockSpec(memory_space=pltpu.MemorySpace.VMEM),  # weight+bias (bf16)
            pl.BlockSpec(memory_space=pltpu.MemorySpace.VMEM),  # gamma/beta (f32)
        ],
        out_specs=pl.BlockSpec(memory_space=pltpu.MemorySpace.VMEM),
        cost_estimate=cost,
    )(patches_p, w_p, bn_p)

    # (P, C_pad) -> real channels -> (N, Do, Ho, Wo, Cout) -> NCDHW
    out = out_p[:, :Cout].reshape(N, Do, Ho, Wo, Cout).transpose(0, 4, 1, 2, 3)
    return out


def reference_forward(x, conv_w, conv_b, bn_gamma, bn_beta):
    """Pure-JAX reference (Conv3d + training-mode BN + multiply), f32 math."""
    s = jax.lax.conv_general_dilated(
        x, conv_w, window_strides=(1, 1, 1), padding="VALID",
        dimension_numbers=("NCDHW", "OIDHW", "NCDHW"))
    s = s + conv_b.reshape(1, -1, 1, 1, 1)
    mean = jnp.mean(s, axis=(0, 2, 3, 4), keepdims=True)
    var = jnp.mean((s - mean) ** 2, axis=(0, 2, 3, 4), keepdims=True)
    t = (bn_gamma.reshape(1, -1, 1, 1, 1) * (s - mean)
         * jax.lax.rsqrt(var + BN_EPS) + bn_beta.reshape(1, -1, 1, 1, 1))
    return s * t


if __name__ == "__main__":
    key = jax.random.PRNGKey(0)
    k_x, k_w, k_b, k_g, k_be = jax.random.split(key, 5)

    # Input matches the module: x1 = torch.randn(1, 3, 4, 4, 4)
    N, Cin, D, H, W = 1, 3, 4, 4, 4
    Cout, ksz = 7, 3

    x = jax.random.normal(k_x, (N, Cin, D, H, W), dtype=jnp.float32)

    # Deterministic parameter init (Conv3d: U(-1/sqrt(fan_in), +); BN affine).
    fan_in = Cin * ksz * ksz * ksz
    bound = 1.0 / (fan_in ** 0.5)
    conv_w = jax.random.uniform(k_w, (Cout, Cin, ksz, ksz, ksz),
                                minval=-bound, maxval=bound, dtype=jnp.float32)
    conv_b = jax.random.uniform(k_b, (Cout,), minval=-bound, maxval=bound,
                                dtype=jnp.float32)
    bn_gamma = 1.0 + 0.1 * jax.random.normal(k_g, (Cout,), dtype=jnp.float32)
    bn_beta = 0.1 * jax.random.normal(k_be, (Cout,), dtype=jnp.float32)

    out = model_forward(x, conv_w, conv_b, bn_gamma, bn_beta)
    out = jax.block_until_ready(out)
    assert out.shape == (N, Cout, D - ksz + 1, H - ksz + 1, W - ksz + 1), out.shape

    # Tight check: reference fed the same bf16-quantized conv inputs as the
    # kernel (products of bf16-representable values are exact in f32, so the
    # only residual difference is summation order).
    def _q(v):
        return v.astype(jnp.bfloat16).astype(jnp.float32)

    ref_match = reference_forward(_q(x), _q(conv_w), _q(conv_b),
                                  bn_gamma, bn_beta)
    assert jnp.allclose(out, ref_match, atol=1e-3, rtol=1e-3), \
        "mismatch vs matched-precision reference"

    # Loose semantics check vs the full-f32 reference: bounds the bf16 input
    # quantization introduced per the perf review (accumulation/epilogue f32).
    ref_f32 = reference_forward(x, conv_w, conv_b, bn_gamma, bn_beta)
    assert jnp.allclose(out, ref_f32, atol=1e-1, rtol=1e-1), \
        "mismatch vs f32 reference"

    print("KERNEL_OK")
</pallas_src>

<mosaic_0001>
module attributes {stable_mosaic.version = 11 : i64} {
  func.func @_fused_conv_bn_mul_kernel(%arg0: memref<8x128xbf16, #tpu.memory_space<vmem>>, %arg1: memref<128x128xbf16, #tpu.memory_space<vmem>>, %arg2: memref<8x128xf32, #tpu.memory_space<vmem>>, %arg3: memref<8x128xf32, #tpu.memory_space<vmem>>) attributes {dimension_semantics = [], scalar_prefetch = 0 : i64, scratch_operands = 0 : i64, tpu.core_type = #tpu.core_type<tc>} {
    %c0 = arith.constant 0 : index
    %c0_0 = arith.constant 0 : index
    %0 = vector.load %arg0[%c0, %c0_0] : memref<8x128xbf16, #tpu.memory_space<vmem>>, vector<8x128xbf16>
    %c0_1 = arith.constant 0 : index
    %c0_2 = arith.constant 0 : index
    %1 = vector.load %arg1[%c0_1, %c0_2] : memref<128x128xbf16, #tpu.memory_space<vmem>>, vector<128x128xbf16>
    %cst = arith.constant dense<0.000000e+00> : vector<8x128xf32>
    %2 = tpu.matmul %0, %1, %cst {dimension_numbers = #tpu.dot_dimension_numbers<[1], [0], [0], [1], [0, 0, 1, 1], [], []>} : vector<8x128xbf16>, vector<128x128xbf16>, vector<8x128xf32> -> vector<8x128xf32>
    %cst_3 = arith.constant dense<0.000000e+00> : vector<128xf32>
    %3 = vector.multi_reduction <add>, %2, %cst_3 [0] : vector<8x128xf32> to vector<128xf32>
    %4 = vector.shape_cast %3 : vector<128xf32> to vector<1x128xf32>
    %cst_4 = arith.constant 1.250000e-01 : f32
    %5 = vector.broadcast %cst_4 : f32 to vector<1x128xf32>
    %6 = arith.mulf %4, %5 : vector<1x128xf32>
    %7 = vector.broadcast %6 : vector<1x128xf32> to vector<8x128xf32>
    %8 = arith.subf %2, %7 : vector<8x128xf32>
    %9 = arith.mulf %8, %8 : vector<8x128xf32>
    %cst_5 = arith.constant dense<0.000000e+00> : vector<128xf32>
    %10 = vector.multi_reduction <add>, %9, %cst_5 [0] : vector<8x128xf32> to vector<128xf32>
    %11 = vector.shape_cast %10 : vector<128xf32> to vector<1x128xf32>
    %cst_6 = arith.constant 1.250000e-01 : f32
    %12 = vector.broadcast %cst_6 : f32 to vector<1x128xf32>
    %13 = arith.mulf %11, %12 : vector<1x128xf32>
    %c0_7 = arith.constant 0 : index
    %c0_8 = arith.constant 0 : index
    %14 = vector.load %arg2[%c0_7, %c0_8] : memref<8x128xf32, #tpu.memory_space<vmem>>, vector<8x128xf32>
    %15 = vector.extract_strided_slice %14 {offsets = [0, 0], sizes = [1, 128], strides = [1, 1]} : vector<8x128xf32> to vector<1x128xf32>
    %16 = vector.extract_strided_slice %14 {offsets = [1, 0], sizes = [1, 128], strides = [1, 1]} : vector<8x128xf32> to vector<1x128xf32>
    %cst_9 = arith.constant 9.99999974E-6 : f32
    %17 = vector.broadcast %cst_9 : f32 to vector<1x128xf32>
    %18 = arith.addf %13, %17 : vector<1x128xf32>
    %19 = math.rsqrt %18 : vector<1x128xf32>
    %20 = arith.mulf %15, %19 : vector<1x128xf32>
    %21 = vector.broadcast %20 : vector<1x128xf32> to vector<8x128xf32>
    %22 = arith.mulf %8, %21 : vector<8x128xf32>
    %23 = vector.broadcast %16 : vector<1x128xf32> to vector<8x128xf32>
    %24 = arith.addf %22, %23 : vector<8x128xf32>
    %25 = arith.mulf %2, %24 : vector<8x128xf32>
    %c0_10 = arith.constant 0 : index
    %c0_11 = arith.constant 0 : index
    %26 = vector.load %arg3[%c0_10, %c0_11] : memref<8x128xf32, #tpu.memory_space<vmem>>, vector<8x128xf32>
    tpu.vector_store %arg3[%c0_10, %c0_11], %25 {strides = array<i32>} : memref<8x128xf32, #tpu.memory_space<vmem>>, vector<8x128xf32>,
    return
  }
}

</mosaic_0001>

<llo_original>
// kernel: model_forward.1
$region0: #{model_forward.1}
  #allocation0 [shape = 'u32[]', space=smem, size = 0x4, offset = 0x4, fixed_abs, tag = 'smem constant byte address 0x4 - core index']
  #allocation1 [shape = 'u32[144,128]{1,0:T(1,128)}', space=vmem, size = 0x12000, scoped, tag = 'internal scratch']
  %s0 = inlined_call_operand.vmem [shape: bf16[8,128], index: 0, kind: input, shape index: {}]
  %s1 = inlined_call_operand.vmem [shape: bf16[128,128], index: 1, kind: input, shape index: {}]
  %s2 = inlined_call_operand.vmem [shape: f32[8,128], index: 2, kind: input, shape index: {}]
  %s3 = inlined_call_operand.hbm [shape: f32[8,128], index: 3, kind: output, shape index: {}]
  %s4 = sld [smem:[#allocation0]]
  $region22: #{model_forward.1} parent=0
    _
  %s6 = ssub.s32 1, %s4
  %s7 = scalar_select 0, %s6, %s4
  $region1: #{model_forward.1} parent=0
    #allocation2 [shape = 'u8[4096]{0}', space=vmem, size = 0x1000, scoped, tag = 'output window, operand 0, single buffered']
    #allocation3 [shape = 's32[1]{0}', space=sflag, size = 0x4, scoped, tag = 'scoped memory for model_forward.1']
    %8 = vsyncpa [#allocation3], 0
    // Predicated region
    $region2: #{model_forward.1} parent=1 // pred_check
      _
    $region3: #{model_forward.1} parent=1 // pred_check_branch
      %10 = sbr.rel (0) target = $region5
    $region4: #{model_forward.1} parent=1 // pred_region
      _
    $region5: #{model_forward.1} parent=1 // pred_fallthru
      _
    // Predicated region
    $region6: #{model_forward.1} parent=1 // pred_check
      _
    $region7: #{model_forward.1} parent=1 // pred_check_branch
      %12 = sbr.rel (0) target = $region9
    $region8: #{model_forward.1} parent=1 // pred_region
      _
    $region9: #{model_forward.1} parent=1 // pred_fallthru
      _
    // Predicated region
    $region10: #{model_forward.1} parent=1 // pred_check
      _
    $region11: #{model_forward.1} parent=1 // pred_check_branch
      %14 = sbr.rel (0) target = $region13
    $region12: #{model_forward.1} parent=1 // pred_region
      _
    $region13: #{model_forward.1} parent=1 // pred_fallthru
      _
    %v16 = vld [vmem:[%s0] sm:$0xf]
    %v17 = vld [vmem:[%s1] sm:$0xf]
    %v18 = vld [vmem:[%s1 + $0x4] sm:$0xf]
    %v19 = vld [vmem:[%s1 + $0x8] sm:$0xf]
    %v20 = vld [vmem:[%s1 + $0xc] sm:$0xf]
    %v21 = vld [vmem:[%s1 + $0x10] sm:$0xf]
    %v22 = vld [vmem:[%s1 + $0x14] sm:$0xf]
    %v23 = vld [vmem:[%s1 + $0x18] sm:$0xf]
    %v24 = vld [vmem:[%s1 + $0x1c] sm:$0xf]
    %v25 = vld [vmem:[%s1 + $0x20] sm:$0xf]
    %v26 = vld [vmem:[%s1 + $0x24] sm:$0xf]
    %v27 = vld [vmem:[%s1 + $0x28] sm:$0xf]
    %v28 = vld [vmem:[%s1 + $0x2c] sm:$0xf]
    %v29 = vld [vmem:[%s1 + $0x30] sm:$0xf]
    %v30 = vld [vmem:[%s1 + $0x34] sm:$0xf]
    %v31 = vld [vmem:[%s1 + $0x38] sm:$0xf]
    %v32 = vld [vmem:[%s1 + $0x3c] sm:$0xf]
    %v49 = vunpack.c.l.b16 %v17
    %v50 = vunpack.c.l.b16 %v18
    %v51 = vunpack.c.l.b16 %v19
    %v52 = vunpack.c.l.b16 %v20
    %v53 = vunpack.c.l.b16 %v21
    %v54 = vunpack.c.l.b16 %v22
    %v55 = vunpack.c.l.b16 %v23
    %v56 = vunpack.c.l.b16 %v24
    %v57 = vunpack.c.l.b16 %v25
    %v58 = vunpack.c.l.b16 %v26
    %v59 = vunpack.c.l.b16 %v27
    %v60 = vunpack.c.l.b16 %v28
    %v61 = vunpack.c.l.b16 %v29
    %v62 = vunpack.c.l.b16 %v30
    %v63 = vunpack.c.l.b16 %v31
    %v64 = vunpack.c.l.b16 %v32
    %v65 = vpack.c.b16 %v50, %v49
    %v66 = vpack.c.b16 %v52, %v51
    %v67 = vpack.c.b16 %v54, %v53
    %v68 = vpack.c.b16 %v56, %v55
    %v69 = vpack.c.b16 %v58, %v57
    %v70 = vpack.c.b16 %v60, %v59
    %v71 = vpack.c.b16 %v62, %v61
    %v72 = vpack.c.b16 %v64, %v63
    %81 = vmatprep.subr.bf16.mxu0 0
    %82 = vmatpush1.bf16.msra.mxu0 %v65
    %83 = vmatprep.subr.bf16.mxu0 0
    %84 = vmatpush1.bf16.msra.mxu0 %v66
    %85 = vmatprep.subr.bf16.mxu0 0
    %86 = vmatpush1.bf16.msra.mxu0 %v67
    %87 = vmatprep.subr.bf16.mxu0 0
    %88 = vmatpush1.bf16.msra.mxu0 %v68
    %89 = vmatprep.subr.bf16.mxu0 0
    %90 = vmatpush1.bf16.msra.mxu0 %v69
    %91 = vmatprep.subr.bf16.mxu0 0
    %92 = vmatpush1.bf16.msra.mxu0 %v70
    %93 = vmatprep.subr.bf16.mxu0 0
    %94 = vmatpush1.bf16.msra.mxu0 %v71
    %95 = vmatprep.subr.bf16.mxu0 0
    %96 = vmatpush1.bf16.msra.mxu0 %v72
    %97 = vmatprep.subr.bf16.mxu0 0
    %98 = vmatpush1.bf16.msra.mxu0 0
    %99 = vmatprep.subr.bf16.mxu0 0
    %100 = vmatpush1.bf16.msra.mxu0 0
    %101 = vmatprep.subr.bf16.mxu0 0
    %102 = vmatpush1.bf16.msra.mxu0 0
    %103 = vmatprep.subr.bf16.mxu0 0
    %104 = vmatpush1.bf16.msra.mxu0 0
    %105 = vmatprep.subr.bf16.mxu0 0
    %106 = vmatpush1.bf16.msra.mxu0 0
    %107 = vmatprep.subr.bf16.mxu0 0
    %108 = vmatpush1.bf16.msra.mxu0 0
    %109 = vmatprep.subr.bf16.mxu0 0
    %110 = vmatpush1.bf16.msra.mxu0 0
    %111 = vmatprep.subr.bf16.mxu0 0
    %112 = vmatpush1.bf16.msra.mxu0 0
    %113 = vmatprep.mubr.bf16.mxu0 0
    %114 = vmatmul.mubr.bf16.gmra.mrb[0].mxu0 %v16
    %v115 = vpop.f32.mrb[0].mxu0
    %v116 = vadd.f32 0.0, %v115
    %v117 = vpop.f32.mrb[0].mxu0
    %v118 = vpop.f32.mrb[0].mxu0
    %v119 = vpop.f32.mrb[0].mxu0
    %120 = vdwg.mxu0
    %v121 = vrot.slane %v116, 4
    %v122 = vadd.f32 %v116, %v121
    %v123 = vrot.slane %v122, 2
    %v124 = vadd.f32 %v122, %v123
    %v125 = vrot.slane %v124, 1
    %v126 = vadd.f32 %v124, %v125
    %v127 = vmul.f32 %v126, 0.125
    %v128 = vsub.f32 %v116, %v127
    %v129 = vmul.f32 %v128, %v128
    %v130 = vrot.slane %v129, 4
    %v131 = vadd.f32 %v129, %v130
    %v132 = vrot.slane %v131, 2
    %v133 = vadd.f32 %v131, %v132
    %v134 = vrot.slane %v133, 1
    %v135 = vadd.f32 %v133, %v134
    %v136 = vmul.f32 %v135, 0.125
    %v137 = vld [vmem:[%s2] sm:$0xff]
    %v138 = vadd.f32 %v136, 1e-05
    %v139 = vrsqrt.pop %v138
    %v140 = vmul.f32 %v137, %v139
    %v141 = vlaneseq
    %v142 = vshrl.u32 %v141, 7
    %v143 = vsub.s32 0, %v142
    %v144 = vrot.slane %v140, %v143
    %v145 = vmul.f32 %v128, %v144
    %v146 = vlaneseq
    %v147 = vshrl.u32 %v146, 7
    %v148 = vsub.s32 1, %v147
    %v149 = vrot.slane %v137, %v148
    %v150 = vadd.f32 %v145, %v149
    %v151 = vmul.f32 %v116, %v150
    %152 = vst [vmem:[#allocation2] sm:$0xff] %v151
    // Predicated region
    $region14: #{model_forward.1} parent=1 // pred_check
      _
    $region15: #{model_forward.1} parent=1 // pred_check_branch
      %154 = sbr.rel (0) target = $region17
    $region16: #{model_forward.1} parent=1 // pred_region
      %s156 = ssub.s32 128, 128
      %157 = vsyncadd [#allocation3], %s156
      %s159 = sshll.u32 [#allocation2], 4
      %s160 = int_to_ptr.vmem [resolvable:$true] %s159
      %162 = dma.vmem_to_hbm [thread:$0]  %s160, 128, %s3, [#allocation3]
    $region17: #{model_forward.1} parent=1 // pred_fallthru
      _
    // Predicated region
    $region18: #{model_forward.1} parent=1 // pred_check
      _
    $region19: #{model_forward.1} parent=1 // pred_check_branch
      %164 = sbr.rel (0) target = $region21
    $region20: #{model_forward.1} parent=1 // pred_region
      %165 = dma.done [#allocation3], 128
    $region21: #{model_forward.1} parent=1 // pred_fallthru
      _
    %166 = vsyncpa [#allocation3], 1

</llo_original>
